<compile_context>
chip_gen: v7x
topology: tpu7x:2x2x1
jax: 0.10.0
libtpu: 0.0.40
codegen_flags: <defaults>
</compile_context>

<pallas_src>
import functools

import jax
import jax.numpy as jnp
from jax.experimental import pallas as pl
from jax.experimental.pallas import tpu as pltpu


def _cdiv(a, b):
    return -(-a // b)


def _head_kernel(x_ref, wt_ref, b_ref, *o_refs, splits):
    # x_ref : (1, Cin, tsp)   wt_ref: (Ctot, Cin)   b_ref: (Ctot, 1) f32
    # o_refs: one per head, (1, c_i, tsp) — lane-dense stores (tsp % 128 == 0)
    acc = jnp.dot(
        wt_ref[...], x_ref[0],
        preferred_element_type=jnp.float32,
        precision=jax.lax.Precision.HIGHEST,
    ) + b_ref[...]
    for o_ref, (start, size) in zip(o_refs, splits):
        o_ref[0] = acc[start:start + size, :].astype(o_ref.dtype)


_VMEM_BUDGET = 40 << 20   # working-set budget used for tile selection
_VMEM_LIMIT = 48 << 20    # scoped-VMEM limit requested (safe on v5e/v6e/v7x)


def _choose_tile_sp(Msp, N, Cin, cout_list, in_bytes, out_bytes, cap=8192):
    """Largest lane-dense (multiple-of-128) spatial tile within the VMEM
    budget, nudged so total step count is even (v7x megacore balance)."""
    full = 128 * _cdiv(Msp, 128)
    tile = min(cap, full)
    # Double-buffered x block + double-buffered per-head out blocks, per lane.
    sum_cout_pad = sum(8 * _cdiv(c, 8) for c in cout_list)
    per_lane = 2 * (Cin * in_bytes + sum_cout_pad * out_bytes)
    max_tile = max(128, (_VMEM_BUDGET // per_lane) // 128 * 128)
    tile = max(128, min(tile, max_tile))

    blocks = _cdiv(Msp, tile)
    if (N * blocks) % 2 == 1:
        if blocks == 1 and full >= 256:
            cand = 128 * _cdiv(_cdiv(Msp, 2), 128)
            if _cdiv(Msp, cand) == 2:
                tile = cand
        elif blocks > 1:
            cand = 128 * _cdiv(_cdiv(Msp, blocks + 1), 128)
            if cand >= 128 and _cdiv(Msp, cand) == blocks + 1:
                tile = cand
    return tile


def _fused_1x1_conv(x3, wt, b, cout_list, *, tile_sp=None):
    """x3: (N, Cin, Msp), wt: (Ctot, Cin), b: (Ctot, 1) f32.

    Returns a tuple of per-head arrays; head i has shape (N, cout_list[i], Msp)
    in the activation dtype.
    """
    N, Cin, Msp = x3.shape
    Ctot = wt.shape[0]
    assert sum(cout_list) == Ctot

    out_dtype = x3.dtype
    in_bytes = jnp.dtype(x3.dtype).itemsize
    out_bytes = jnp.dtype(out_dtype).itemsize

    if tile_sp is None:
        tile_sp = _choose_tile_sp(Msp, N, Cin, cout_list, in_bytes, out_bytes)

    grid = (N, _cdiv(Msp, tile_sp))   # cdiv grid, tail block masked on store

    splits, off = [], 0
    for c in cout_list:
        splits.append((off, c))
        off += c

    out_shape = tuple(
        jax.ShapeDtypeStruct((N, c, Msp), out_dtype) for c in cout_list)
    out_specs = tuple(
        pl.BlockSpec((1, c, tile_sp), lambda n, j: (n, 0, j)) for c in cout_list)

    flops = 2 * N * Msp * Cin * Ctot
    bytes_accessed = (N * Cin * Msp * in_bytes + Ctot * Cin * in_bytes
                      + Ctot * 4 + N * Ctot * Msp * out_bytes)

    kernel = functools.partial(_head_kernel, splits=tuple(splits))

    return pl.pallas_call(
        kernel,
        out_shape=out_shape,
        grid_spec=pltpu.PrefetchScalarGridSpec(
            num_scalar_prefetch=0,
            grid=grid,
            in_specs=[
                pl.BlockSpec((1, Cin, tile_sp), lambda n, j: (n, 0, j)),
                # Weights / bias: constant index_map -> resident, no re-DMA.
                pl.BlockSpec((Ctot, Cin), lambda n, j: (0, 0)),
                pl.BlockSpec((Ctot, 1), lambda n, j: (0, 0)),
            ],
            out_specs=out_specs,
        ),
        compiler_params=pltpu.CompilerParams(
            dimension_semantics=("parallel", "parallel"),
            vmem_limit_bytes=_VMEM_LIMIT,
        ),
        cost_estimate=pl.CostEstimate(
            flops=flops, transcendentals=0, bytes_accessed=bytes_accessed),
    )(x3, wt, b)


def init_head_params(key, num_input, num_pred, num_cls, num_iou=2,
                     use_dir=False, num_dir=1):
    """Deterministic synthetic params matching nn.Conv2d(*, *, 1) shapes."""
    ks = jax.random.split(key, 8)

    def conv_w(k, cout, cin):
        # torch Conv2d weight is (cout, cin, 1, 1); stored squeezed (cout, cin)
        return jax.random.normal(k, (cout, cin), jnp.float32) * 0.05

    def conv_b(k, cout):
        return jax.random.normal(k, (cout,), jnp.float32) * 0.01

    params = {
        "w_box": conv_w(ks[0], num_pred, num_input),
        "b_box": conv_b(ks[1], num_pred),
        "w_cls": conv_w(ks[2], num_cls, num_input),
        "b_cls": conv_b(ks[3], num_cls),
        "w_iou": conv_w(ks[4], num_iou, num_input),  # conv_iou has bias=False
    }
    if use_dir:
        params["w_dir"] = conv_w(ks[5], num_dir, num_input)
        params["b_dir"] = conv_b(ks[6], num_dir)
    return params


def head_forward(x, params, *, num_pred, num_cls, num_iou=2,
                 use_dir=False, num_dir=1):
    """Mirror of Head.forward. x: (N, C, H, W), f32 or bf16 (NCHW layout)."""
    N, C, H, W = x.shape
    Msp = H * W
    x3 = x.reshape(N, C, Msp)  # free reshape — no transpose, no extra HBM pass

    wts = [params["w_box"], params["w_cls"]]
    bs = [params["b_box"], params["b_cls"]]
    couts = [num_pred, num_cls]
    names = ["box_preds", "cls_preds"]
    if use_dir:
        wts.append(params["w_dir"])
        bs.append(params["b_dir"])
        couts.append(num_dir)
        names.append("dir_cls_preds")
    wts.append(params["w_iou"])
    bs.append(jnp.zeros((num_iou,), jnp.float32))  # conv_iou: bias=False
    couts.append(num_iou)
    names.append("iou_preds")

    # Tiny concats; weights follow the activation dtype (bf16 producer path),
    # bias stays f32 and is added onto the f32 accumulator in-kernel.
    wt = jnp.concatenate(wts, axis=0).astype(x.dtype)           # (Ctot, Cin)
    b = jnp.concatenate(bs, axis=0).astype(jnp.float32)[:, None]  # (Ctot, 1)

    outs = _fused_1x1_conv(x3, wt, b, tuple(couts))  # tuple of (N, c_i, Msp)
    ret = {nm: o.reshape(N, c, H, W) for nm, o, c in zip(names, outs, couts)}
    if not use_dir:
        # matches torch.zeros((len(box_preds), 1, 2)) placeholder exactly
        ret["dir_cls_preds"] = jnp.zeros((N, 1, 2), jnp.float32)
    return ret


if __name__ == "__main__":
    def ref_conv(x, w, b):
        y = jnp.einsum("nchw,oc->nohw", x.astype(jnp.float32),
                       w.astype(jnp.float32))
        if b is not None:
            y = y + b[None, :, None, None]
        return y

    key = jax.random.PRNGKey(0)

    # --- case 1: (2, 4, 16, 16), no dir head, f32 ---------------------------
    N, C, H, W = 2, 4, 16, 16
    num_pred, num_cls, num_iou = 14, 2, 2
    kx, kp, key = jax.random.split(key, 3)
    x = jax.random.normal(kx, (N, C, H, W), jnp.float32)
    params = init_head_params(kp, C, num_pred, num_cls, num_iou, use_dir=False)

    fwd = jax.jit(functools.partial(
        head_forward, num_pred=num_pred, num_cls=num_cls,
        num_iou=num_iou, use_dir=False))
    out = fwd(x, params)
    jax.block_until_ready(out)

    assert out["box_preds"].shape == (N, num_pred, H, W)
    assert out["cls_preds"].shape == (N, num_cls, H, W)
    assert out["iou_preds"].shape == (N, num_iou, H, W)
    assert out["dir_cls_preds"].shape == (N, 1, 2)
    assert jnp.allclose(out["box_preds"],
                        ref_conv(x, params["w_box"], params["b_box"]), atol=1e-5)
    assert jnp.allclose(out["cls_preds"],
                        ref_conv(x, params["w_cls"], params["b_cls"]), atol=1e-5)
    assert jnp.allclose(out["iou_preds"],
                        ref_conv(x, params["w_iou"], None), atol=1e-5)
    assert jnp.all(out["dir_cls_preds"] == 0)

    # --- case 2: spatial size NOT a multiple of 128, with dir head ----------
    # (exercises the cdiv grid + masked tail path and the use_dir branch)
    N2, H2, W2, num_dir = 1, 10, 12, 4
    kx2, kp2, key = jax.random.split(key, 3)
    x2 = jax.random.normal(kx2, (N2, C, H2, W2), jnp.float32)
    params2 = init_head_params(kp2, C, num_pred, num_cls, num_iou,
                               use_dir=True, num_dir=num_dir)
    fwd2 = jax.jit(functools.partial(
        head_forward, num_pred=num_pred, num_cls=num_cls,
        num_iou=num_iou, use_dir=True, num_dir=num_dir))
    out2 = fwd2(x2, params2)
    jax.block_until_ready(out2)

    assert out2["dir_cls_preds"].shape == (N2, num_dir, H2, W2)
    assert jnp.allclose(out2["box_preds"],
                        ref_conv(x2, params2["w_box"], params2["b_box"]), atol=1e-5)
    assert jnp.allclose(out2["cls_preds"],
                        ref_conv(x2, params2["w_cls"], params2["b_cls"]), atol=1e-5)
    assert jnp.allclose(out2["dir_cls_preds"],
                        ref_conv(x2, params2["w_dir"], params2["b_dir"]), atol=1e-5)
    assert jnp.allclose(out2["iou_preds"],
                        ref_conv(x2, params2["w_iou"], None), atol=1e-5)

    # --- case 3: bf16 activations (producer-side bf16 path) -----------------
    x_bf = x.astype(jnp.bfloat16)   # stands in for a producer handing off bf16
    out3 = fwd(x_bf, params)
    jax.block_until_ready(out3)
    assert out3["box_preds"].dtype == jnp.bfloat16
    assert jnp.allclose(out3["box_preds"].astype(jnp.float32),
                        ref_conv(x_bf, params["w_box"], params["b_box"]),
                        atol=5e-2, rtol=5e-2)
    assert jnp.allclose(out3["iou_preds"].astype(jnp.float32),
                        ref_conv(x_bf, params["w_iou"], None),
                        atol=5e-2, rtol=5e-2)

    print("KERNEL_OK")
</pallas_src>

<mosaic_0001>
module attributes {stable_mosaic.version = 11 : i64} {
  func.func @_head_kernel(%arg0: i32, %arg1: i32, %arg2: memref<1x4x256xf32, #tpu.memory_space<vmem>>, %arg3: memref<18x4xf32, #tpu.memory_space<vmem>>, %arg4: memref<18x1xf32, #tpu.memory_space<vmem>>, %arg5: memref<1x14x256xf32, #tpu.memory_space<vmem>>, %arg6: memref<1x2x256xf32, #tpu.memory_space<vmem>>, %arg7: memref<1x2x256xf32, #tpu.memory_space<vmem>>) attributes {dimension_semantics = [#tpu.dimension_semantics<parallel>, #tpu.dimension_semantics<parallel>], iteration_bounds = array<i64: 2, 1>, scalar_prefetch = 0 : i64, scratch_operands = 0 : i64, tpu.core_type = #tpu.core_type<tc>, window_params = [{transform_indices = @transform_0, window_bounds = array<i64: 1, 4, 256>}, {pipeline_mode = #tpu.pipeline_mode<synchronous>, transform_indices = @transform_1, window_bounds = array<i64: 18, 4>}, {pipeline_mode = #tpu.pipeline_mode<synchronous>, transform_indices = @transform_2, window_bounds = array<i64: 18, 1>}, {transform_indices = @transform_3, window_bounds = array<i64: 1, 14, 256>}, {transform_indices = @transform_4, window_bounds = array<i64: 1, 2, 256>}, {transform_indices = @transform_5, window_bounds = array<i64: 1, 2, 256>}]} {
    %c0 = arith.constant 0 : index
    %c0_0 = arith.constant 0 : index
    %0 = vector.load %arg3[%c0, %c0_0] : memref<18x4xf32, #tpu.memory_space<vmem>>, vector<18x4xf32>
    %c0_1 = arith.constant 0 : index
    %c0_2 = arith.constant 0 : index
    %c0_3 = arith.constant 0 : index
    %1 = vector.load %arg2[%c0_1, %c0_2, %c0_3] : memref<1x4x256xf32, #tpu.memory_space<vmem>>, vector<1x4x256xf32>
    %2 = vector.shape_cast %1 : vector<1x4x256xf32> to vector<4x256xf32>
    %cst = arith.constant dense<0.000000e+00> : vector<18x256xf32>
    %3 = tpu.matmul %0, %2, %cst {dimension_numbers = #tpu.dot_dimension_numbers<[1], [0], [0], [1], [0, 0, 1, 1], [], []>, precision = #tpu.contract_precision<fp32>} : vector<18x4xf32>, vector<4x256xf32>, vector<18x256xf32> -> vector<18x256xf32>
    %c0_4 = arith.constant 0 : index
    %c0_5 = arith.constant 0 : index
    %4 = vector.load %arg4[%c0_4, %c0_5] : memref<18x1xf32, #tpu.memory_space<vmem>>, vector<18x1xf32>
    %5 = vector.broadcast %4 : vector<18x1xf32> to vector<18x256xf32>
    %6 = arith.addf %3, %5 : vector<18x256xf32>
    %7 = vector.extract_strided_slice %6 {offsets = [0, 0], sizes = [14, 256], strides = [1, 1]} : vector<18x256xf32> to vector<14x256xf32>
    %c0_6 = arith.constant 0 : index
    %c0_7 = arith.constant 0 : index
    %c0_8 = arith.constant 0 : index
    %8 = vector.load %arg5[%c0_6, %c0_7, %c0_8] : memref<1x14x256xf32, #tpu.memory_space<vmem>>, vector<1x14x256xf32>
    %9 = vector.shape_cast %8 : vector<1x14x256xf32> to vector<14x256xf32>
    %10 = vector.shape_cast %7 : vector<14x256xf32> to vector<1x14x256xf32>
    tpu.vector_store %arg5[%c0_6, %c0_7, %c0_8], %10 {strides = array<i32>} : memref<1x14x256xf32, #tpu.memory_space<vmem>>, vector<1x14x256xf32>,
    %11 = vector.extract_strided_slice %6 {offsets = [14, 0], sizes = [2, 256], strides = [1, 1]} : vector<18x256xf32> to vector<2x256xf32>
    %c0_9 = arith.constant 0 : index
    %c0_10 = arith.constant 0 : index
    %c0_11 = arith.constant 0 : index
    %12 = vector.load %arg6[%c0_9, %c0_10, %c0_11] : memref<1x2x256xf32, #tpu.memory_space<vmem>>, vector<1x2x256xf32>
    %13 = vector.shape_cast %12 : vector<1x2x256xf32> to vector<2x256xf32>
    %14 = vector.shape_cast %11 : vector<2x256xf32> to vector<1x2x256xf32>
    tpu.vector_store %arg6[%c0_9, %c0_10, %c0_11], %14 {strides = array<i32>} : memref<1x2x256xf32, #tpu.memory_space<vmem>>, vector<1x2x256xf32>,
    %15 = vector.extract_strided_slice %6 {offsets = [16, 0], sizes = [2, 256], strides = [1, 1]} : vector<18x256xf32> to vector<2x256xf32>
    %c0_12 = arith.constant 0 : index
    %c0_13 = arith.constant 0 : index
    %c0_14 = arith.constant 0 : index
    %16 = vector.load %arg7[%c0_12, %c0_13, %c0_14] : memref<1x2x256xf32, #tpu.memory_space<vmem>>, vector<1x2x256xf32>
    %17 = vector.shape_cast %16 : vector<1x2x256xf32> to vector<2x256xf32>
    %18 = vector.shape_cast %15 : vector<2x256xf32> to vector<1x2x256xf32>
    tpu.vector_store %arg7[%c0_12, %c0_13, %c0_14], %18 {strides = array<i32>} : memref<1x2x256xf32, #tpu.memory_space<vmem>>, vector<1x2x256xf32>,
    return
  }
  func.func @transform_0(%arg0: i32, %arg1: i32) -> (i32, i32, i32) {
    %c0_i32 = arith.constant 0 : i32
    %c0_i32_0 = arith.constant 0 : i32
    return %arg0, %c0_i32, %arg1 : i32, i32, i32
  }
  func.func @transform_1(%arg0: i32, %arg1: i32) -> (i32, i32) {
    %c0_i32 = arith.constant 0 : i32
    %c0_i32_0 = arith.constant 0 : i32
    %c0_i32_1 = arith.constant 0 : i32
    return %c0_i32, %c0_i32_0 : i32, i32
  }
  func.func @transform_2(%arg0: i32, %arg1: i32) -> (i32, i32) {
    %c0_i32 = arith.constant 0 : i32
    %c0_i32_0 = arith.constant 0 : i32
    %c0_i32_1 = arith.constant 0 : i32
    return %c0_i32, %c0_i32_0 : i32, i32
  }
  func.func @transform_3(%arg0: i32, %arg1: i32) -> (i32, i32, i32) {
    %c0_i32 = arith.constant 0 : i32
    %c0_i32_0 = arith.constant 0 : i32
    return %arg0, %c0_i32, %arg1 : i32, i32, i32
  }
  func.func @transform_4(%arg0: i32, %arg1: i32) -> (i32, i32, i32) {
    %c0_i32 = arith.constant 0 : i32
    %c0_i32_0 = arith.constant 0 : i32
    return %arg0, %c0_i32, %arg1 : i32, i32, i32
  }
  func.func @transform_5(%arg0: i32, %arg1: i32) -> (i32, i32, i32) {
    %c0_i32 = arith.constant 0 : i32
    %c0_i32_0 = arith.constant 0 : i32
    return %arg0, %c0_i32, %arg1 : i32, i32, i32
  }
}

</mosaic_0001>

<llo_original>
// kernel: head_forward.1
$region0: #{head_forward.1}
  #allocation0 [shape = 'u32[]', space=smem, size = 0x4, offset = 0x4, fixed_abs, tag = 'smem constant byte address 0x4 - core index']
  #allocation1 [shape = 'u32[144,128]{1,0:T(1,128)}', space=vmem, size = 0x12000, scoped, tag = 'internal scratch']
  %s0 = inlined_call_operand.vmem [shape: f32[2,4,256], index: 0, kind: input, shape index: {}]
  %s1 = inlined_call_operand.vmem [shape: f32[18,4], index: 1, kind: input, shape index: {}]
  %s2 = inlined_call_operand.vmem [shape: f32[18,1], index: 2, kind: input, shape index: {}]
  %s3 = inlined_call_operand.vmem [shape: f32[2,14,256], index: 3, kind: output, shape index: {0}]
  %s4 = inlined_call_operand.vmem [shape: f32[2,2,256], index: 4, kind: output, shape index: {1}]
  %s5 = inlined_call_operand.vmem [shape: f32[2,2,256], index: 5, kind: output, shape index: {2}]
  %6 = xla_tuple %s3, %s4, %s5
  %s7 = sld [smem:[#allocation0]]
  $region61: #{head_forward.1} parent=0
    _
  %s9 = ssub.s32 1, %s7
  %s10 = scalar_select 0, %s9, %s7
  loop: start=0, step=1, limit=4
  $region2: #{head_forward.1} parent=0 // loop_pre_header
    _
  $region3: #{head_forward.1} parent=0 // loop_header
    %s12 = sphi 0, %s16
    %p13 = scmp.ge.s32.totalorder %s12, 4
    %s19 = sphi 0, %s31
    %s20 = sphi 0, %s27
    %s21 = sphi 0, %s19
    %s22 = sphi 0, %s20
    %s23 = sphi 0, %s21
    %s24 = sphi 0, %s22
    %s36 = sphi 0, %s38
    %s39 = sphi 0, %s36
    %s40 = sphi 0, %s39
    %s56 = sphi 0, %s40
    %s60 = sphi 0, %s60
    %s62 = sphi 0, %s60
    %s63 = sphi 0, %s62
    %s77 = sphi 0, %s63
    %s81 = sphi 0, %s81
    %s83 = sphi 0, %s81
    %s84 = sphi 0, %s83
    %s98 = sphi 0, %s84
    %s106 = sphi 0, %s108
    %s109 = sphi 0, %s106
    %s110 = sphi 0, %s109
    %s126 = sphi 0, %s110
    %s134 = sphi 0, %s136
    %s137 = sphi 0, %s134
    %s138 = sphi 0, %s137
    %s154 = sphi 0, %s138
    %s162 = sphi 0, %s164
    %s165 = sphi 0, %s162
    %s166 = sphi 0, %s165
    %s182 = sphi 0, %s166
  $region4: #{head_forward.1} parent=0 // loop_header_branch
    %15 = sbr.rel (%p13) target = $region8
  $region5: #{head_forward.1} parent=0 // loop_body
    %s17 = ssub.s32 %s12, 1
    %s18 = ssub.s32 %s12, 2
    %s25 = sadd.s32 1, %s20
    %p26 = scmp.ge.s32.totalorder %s25, 1
    %s27 = scalar_select %p26, 0, %s25
    %s28 = sadd.s32 1, %s19
    %s29 = scalar_select %p26, %s28, %s19
    %p30 = scmp.ge.s32.totalorder %s29, 2
    %s31 = scalar_select %p30, 0, %s29
    %s32 = ssub.s32 %s19, %s31
    %s33 = ssub.s32 %s20, %s27
    %s34 = sor.u32 %s32, %s33
    %p35 = scmp.eq.s32.totalorder %s34, 0
    %s37 = sadd.s32 %s36, 1
    %s38 = scalar_select %p35, %s36, %s37
    %p41 = pneg %p35
    %p42 = scmp.eq.s32.totalorder %s12, 1
    %p43 = por %p41, %p42
    %p44 = scmp.ne.s32.totalorder %s36, %s39
    %p45 = scmp.eq.s32.totalorder %s12, 0
    %p46 = por %p44, %p45
    %p47 = scmp.ne.s32.totalorder %s36, %s39
    %p48 = scmp.eq.s32.totalorder %s17, 1
    %p49 = por %p47, %p48
    %p50 = scmp.ne.s32.totalorder %s39, %s40
    %p51 = scmp.eq.s32.totalorder %s17, 0
    %p52 = por %p50, %p51
    %p53 = scmp.ne.s32.totalorder %s39, %s40
    %p54 = scmp.eq.s32.totalorder %s18, 1
    %p55 = por %p53, %p54
    %p57 = scmp.ne.s32.totalorder %s40, %s56
    %p58 = scmp.eq.s32.totalorder %s18, 0
    %p59 = por %p57, %p58
    %s61 = sadd.s32 %s60, 1
    %p64 = scmp.eq.s32.totalorder %s12, 1
    %p65 = scmp.ne.s32.totalorder %s60, %s62
    %p66 = scmp.eq.s32.totalorder %s12, 0
    %p67 = por %p65, %p66
    %p68 = scmp.ne.s32.totalorder %s60, %s62
    %p69 = scmp.eq.s32.totalorder %s17, 1
    %p70 = por %p68, %p69
    %p71 = scmp.ne.s32.totalorder %s62, %s63
    %p72 = scmp.eq.s32.totalorder %s17, 0
    %p73 = por %p71, %p72
    %p74 = scmp.ne.s32.totalorder %s62, %s63
    %p75 = scmp.eq.s32.totalorder %s18, 1
    %p76 = por %p74, %p75
    %p78 = scmp.ne.s32.totalorder %s63, %s77
    %p79 = scmp.eq.s32.totalorder %s18, 0
    %p80 = por %p78, %p79
    %s82 = sadd.s32 %s81, 1
    %p85 = scmp.eq.s32.totalorder %s12, 1
    %p86 = scmp.ne.s32.totalorder %s81, %s83
    %p87 = scmp.eq.s32.totalorder %s12, 0
    %p88 = por %p86, %p87
    %p89 = scmp.ne.s32.totalorder %s81, %s83
    %p90 = scmp.eq.s32.totalorder %s17, 1
    %p91 = por %p89, %p90
    %p92 = scmp.ne.s32.totalorder %s83, %s84
    %p93 = scmp.eq.s32.totalorder %s17, 0
    %p94 = por %p92, %p93
    %p95 = scmp.ne.s32.totalorder %s83, %s84
    %p96 = scmp.eq.s32.totalorder %s18, 1
    %p97 = por %p95, %p96
    %p99 = scmp.ne.s32.totalorder %s84, %s98
    %p100 = scmp.eq.s32.totalorder %s18, 0
    %p101 = por %p99, %p100
    %s102 = ssub.s32 %s19, %s31
    %s103 = ssub.s32 %s20, %s27
    %s104 = sor.u32 %s102, %s103
    %p105 = scmp.eq.s32.totalorder %s104, 0
    %s107 = sadd.s32 %s106, 1
    %s108 = scalar_select %p105, %s106, %s107
    %p111 = pneg %p105
    %p112 = scmp.eq.s32.totalorder %s12, 1
    %p113 = por %p111, %p112
    %p114 = scmp.ne.s32.totalorder %s106, %s109
    %p115 = scmp.eq.s32.totalorder %s12, 0
    %p116 = por %p114, %p115
    %p117 = scmp.ne.s32.totalorder %s106, %s109
    %p118 = scmp.eq.s32.totalorder %s17, 1
    %p119 = por %p117, %p118
    %p120 = scmp.ne.s32.totalorder %s109, %s110
    %p121 = scmp.eq.s32.totalorder %s17, 0
    %p122 = por %p120, %p121
    %p123 = scmp.ne.s32.totalorder %s109, %s110
    %p124 = scmp.eq.s32.totalorder %s18, 1
    %p125 = por %p123, %p124
    %p127 = scmp.ne.s32.totalorder %s110, %s126
    %p128 = scmp.eq.s32.totalorder %s18, 0
    %p129 = por %p127, %p128
    %s130 = ssub.s32 %s19, %s31
    %s131 = ssub.s32 %s20, %s27
    %s132 = sor.u32 %s130, %s131
    %p133 = scmp.eq.s32.totalorder %s132, 0
    %s135 = sadd.s32 %s134, 1
    %s136 = scalar_select %p133, %s134, %s135
    %p139 = pneg %p133
    %p140 = scmp.eq.s32.totalorder %s12, 1
    %p141 = por %p139, %p140
    %p142 = scmp.ne.s32.totalorder %s134, %s137
    %p143 = scmp.eq.s32.totalorder %s12, 0
    %p144 = por %p142, %p143
    %p145 = scmp.ne.s32.totalorder %s134, %s137
    %p146 = scmp.eq.s32.totalorder %s17, 1
    %p147 = por %p145, %p146
    %p148 = scmp.ne.s32.totalorder %s137, %s138
    %p149 = scmp.eq.s32.totalorder %s17, 0
    %p150 = por %p148, %p149
    %p151 = scmp.ne.s32.totalorder %s137, %s138
    %p152 = scmp.eq.s32.totalorder %s18, 1
    %p153 = por %p151, %p152
    %p155 = scmp.ne.s32.totalorder %s138, %s154
    %p156 = scmp.eq.s32.totalorder %s18, 0
    %p157 = por %p155, %p156
    %s158 = ssub.s32 %s19, %s31
    %s159 = ssub.s32 %s20, %s27
    %s160 = sor.u32 %s158, %s159
    %p161 = scmp.eq.s32.totalorder %s160, 0
    %s163 = sadd.s32 %s162, 1
    %s164 = scalar_select %p161, %s162, %s163
    %p167 = pneg %p161
    %p168 = scmp.eq.s32.totalorder %s12, 1
    %p169 = por %p167, %p168
    %p170 = scmp.ne.s32.totalorder %s162, %s165
    %p171 = scmp.eq.s32.totalorder %s12, 0
    %p172 = por %p170, %p171
    %p173 = scmp.ne.s32.totalorder %s162, %s165
    %p174 = scmp.eq.s32.totalorder %s17, 1
    %p175 = por %p173, %p174
    %p176 = scmp.ne.s32.totalorder %s165, %s166
    %p177 = scmp.eq.s32.totalorder %s17, 0
    %p178 = por %p176, %p177
    %p179 = scmp.ne.s32.totalorder %s165, %s166
    %p180 = scmp.eq.s32.totalorder %s18, 1
    %p181 = por %p179, %p180
    %p183 = scmp.ne.s32.totalorder %s166, %s182
    %p184 = scmp.eq.s32.totalorder %s18, 0
    %p185 = por %p183, %p184
    %p186 = scmp.le.s32.totalorder 1, %s12
    %p187 = scmp.lt.s32.totalorder %s12, 3
    %p188 = pnand %p186, %p187
    %p189 = pneg %p188
    // Predicated region
    $region9: #{head_forward.1} parent=5 // pred_check
      _
    $region10: #{head_forward.1} parent=5 // pred_check_branch
      %191 = sbr.rel (%p188) target = $region12
    $region11: #{head_forward.1} parent=5 // pred_region
      %s192 = ssub.s32 %s12, 1
      // Predicated region
      $region13: #{head_forward.1} parent=11 // pred_check
        %p193 = pneg %p73
      $region14: #{head_forward.1} parent=11 // pred_check_branch
        %195 = sbr.rel (%p193) target = $region16
      $region15: #{head_forward.1} parent=11 // pred_region
        _
      $region16: #{head_forward.1} parent=11 // pred_fallthru
        _
      // Predicated region
      $region17: #{head_forward.1} parent=11 // pred_check
        %p196 = pneg %p94
      $region18: #{head_forward.1} parent=11 // pred_check_branch
        %198 = sbr.rel (%p196) target = $region20
      $region19: #{head_forward.1} parent=11 // pred_region
        _
      $region20: #{head_forward.1} parent=11 // pred_fallthru
        _
    $region12: #{head_forward.1} parent=5 // pred_fallthru
      _
    %p199 = scmp.lt.s32.totalorder %s12, 2
    // Predicated region
    $region21: #{head_forward.1} parent=5 // pred_check
      %p200 = pneg %p199
    $region22: #{head_forward.1} parent=5 // pred_check_branch
      %202 = sbr.rel (%p200) target = $region24
    $region23: #{head_forward.1} parent=5 // pred_region
      // Predicated region
      $region25: #{head_forward.1} parent=23 // pred_check
        %p203 = pneg %p46
      $region26: #{head_forward.1} parent=23 // pred_check_branch
        %205 = sbr.rel (%p203) target = $region28
      $region27: #{head_forward.1} parent=23 // pred_region
        %s206 = smul.u32 2, %s20
        %p207 = scmp.lt.s32.totalorder %s19, 1
        %s208 = scalar_select %p207, %s19, 1
        %p209 = scmp.lt.s32.totalorder %s206, 1
        %s210 = scalar_select %p209, %s206, 1
        %s211 = smul.addr %s208, 2
        %s212 = sadd.s32 %s210, %s211
        %s213 = smul.addr %s212, 4
        %s214 = scalar_lea.vmem %s0, %s213
        %s215 = smul.u32 2, %s20
      $region28: #{head_forward.1} parent=23 // pred_fallthru
        _
    $region24: #{head_forward.1} parent=5 // pred_fallthru
      _
    %p216 = scmp.le.s32.totalorder 1, %s12
    %p217 = scmp.lt.s32.totalorder %s12, 3
    %p218 = pnand %p216, %p217
    %p219 = pneg %p218
    // Predicated region
    $region29: #{head_forward.1} parent=5 // pred_check
      _
    $region30: #{head_forward.1} parent=5 // pred_check_branch
      %221 = sbr.rel (%p218) target = $region32
    $region31: #{head_forward.1} parent=5 // pred_region
      %s222 = ssub.s32 %s12, 1
      %s223 = smul.u32 2, %s22
      %p224 = scmp.lt.s32.totalorder %s21, 1
      %s225 = scalar_select %p224, %s21, 1
      %p226 = scmp.lt.s32.totalorder %s223, 1
      %s227 = scalar_select %p226, %s223, 1
      %s228 = smul.addr %s225, 2
      %s229 = sadd.s32 %s227, %s228
      %s230 = smul.addr %s229, 4
      %s231 = scalar_lea.vmem %s0, %s230
      %p232 = pneg %p52
      %p233 = pneg %p49
      %p234 = pneg %p73
      %p235 = pneg %p70
      %p236 = pneg %p94
      %p237 = pneg %p91
      %p238 = pneg %p122
      %p239 = pneg %p119
      %s240 = smul.u32 2, %s22
      %p241 = scmp.lt.s32.totalorder %s21, 1
      %s242 = scalar_select %p241, %s21, 1
      %p243 = scmp.lt.s32.totalorder %s240, 1
      %s244 = scalar_select %p243, %s240, 1
      %s245 = smul.addr %s242, 4
      %s246 = sadd.s32 %s244, %s245
      %s247 = smul.addr %s246, 8
      %s248 = scalar_lea.vmem %s3, %s247
      %p249 = pneg %p150
      %p250 = pneg %p147
      %s251 = smul.u32 2, %s22
      %p252 = scmp.lt.s32.totalorder %s21, 1
      %s253 = scalar_select %p252, %s21, 1
      %p254 = scmp.lt.s32.totalorder %s251, 1
      %s255 = scalar_select %p254, %s251, 1
      %s256 = smul.addr %s253, 2
      %s257 = sadd.s32 %s255, %s256
      %s258 = smul.addr %s257, 2
      %s259 = scalar_lea.vmem %s4, %s258
      %p260 = pneg %p178
      %p261 = pneg %p175
      %s262 = smul.u32 2, %s22
      %p263 = scmp.lt.s32.totalorder %s21, 1
      %s264 = scalar_select %p263, %s21, 1
      %p265 = scmp.lt.s32.totalorder %s262, 1
      %s266 = scalar_select %p265, %s262, 1
      %s267 = smul.addr %s264, 2
      %s268 = sadd.s32 %s266, %s267
      %s269 = smul.addr %s268, 2
      %s270 = scalar_lea.vmem %s5, %s269
      %s271 = smul.u32 2, %s22
      %p272 = scmp.lt.s32.totalorder %s21, 1
      %s273 = scalar_select %p272, %s21, 1
      %p274 = scmp.lt.s32.totalorder %s271, 1
      %s275 = scalar_select %p274, %s271, 1
      %s276 = smul.addr %s273, 2
      %s277 = sadd.s32 %s275, %s276
      %s278 = smul.addr %s277, 4
      %s279 = scalar_lea.vmem %s0, %s278
      %s280 = smul.u32 2, %s22
      %s281 = smul.u32 2, %s22
      %p282 = scmp.lt.s32.totalorder %s21, 1
      %s283 = scalar_select %p282, %s21, 1
      %p284 = scmp.lt.s32.totalorder %s281, 1
      %s285 = scalar_select %p284, %s281, 1
      %s286 = smul.addr %s283, 4
      %s287 = sadd.s32 %s285, %s286
      %s288 = smul.addr %s287, 8
      %s289 = scalar_lea.vmem %s3, %s288
      %s290 = smul.u32 2, %s22
      %s291 = smul.u32 2, %s22
      %p292 = scmp.lt.s32.totalorder %s21, 1
      %s293 = scalar_select %p292, %s21, 1
      %p294 = scmp.lt.s32.totalorder %s291, 1
      %s295 = scalar_select %p294, %s291, 1
      %s296 = smul.addr %s293, 2
      %s297 = sadd.s32 %s295, %s296
      %s298 = smul.addr %s297, 2
      %s299 = scalar_lea.vmem %s4, %s298
      %s300 = smul.u32 2, %s22
      %s301 = smul.u32 2, %s22
      %p302 = scmp.lt.s32.totalorder %s21, 1
      %s303 = scalar_select %p302, %s21, 1
      %p304 = scmp.lt.s32.totalorder %s301, 1
      %s305 = scalar_select %p304, %s301, 1
      %s306 = smul.addr %s303, 2
      %s307 = sadd.s32 %s305, %s306
      %s308 = smul.addr %s307, 2
      %s309 = scalar_lea.vmem %s5, %s308
      %s310 = smul.u32 2, %s22
      %v311 = vld [vmem:[%s1] sm:$0xff]
      %v312 = vld [vmem:[%s1 + $0x8] sm:$0xff]
      %v313 = vld [vmem:[%s1 + $0x10] sm:$0x3]
      %v314 = vld [vmem:[%s279] sm:$0xff]
      %v315 = vld [vmem:[%s2] sm:$0xff]
      %v316 = vld [vmem:[%s2 + $0x8] sm:$0xff]
      %v317 = vld [vmem:[%s2 + $0x10] sm:$0x3]
      %319 = vset.pattern.permute.xlu0 0
      %320 = vperm.xlu0 %319, %v315
      %v321 = vpop.permute.xlu0 %320
      %324 = vset.pattern.permute.xlu0 0
      %325 = vperm.xlu0 %324, %v316
      %v326 = vpop.permute.xlu0 %325
      %329 = vset.pattern.permute.xlu0 0
      %330 = vperm.xlu0 %329, %v317
      %v331 = vpop.permute.xlu0 %330
      %v334 = vcombine.high %v314, %v314
      %vm335 = vcmask 31744
      %v337 = vsel %vm335, %v311, 0
      %v340 = vsel %vm335, %v312, 0
      %v343 = vsel %vm335, %v313, 0
      %vm345 = vcmask 1043456
      %v346 = vsel %vm345, %v314, 0
      %v348 = vsel %vm345, %v334, 0
      %v350 = vand.u32 %v348, 4294901760
      %351 = vmatprep.subr.mxu0 %v350
      %v352 = vand.u32 %v346, 4294901760
      %353 = vmatpush1.msra.mxu0 %v352
      %354 = vmatprep.subr.mxu0 0.0
      %355 = vmatpush1.msra.mxu0 0.0
      %356 = vmatprep.subr.mxu0 0.0
      %357 = vmatpush1.msra.mxu0 0.0
      %358 = vmatprep.subr.mxu0 0.0
      %359 = vmatpush1.msra.mxu0 0.0
      %360 = vmatprep.subr.mxu0 0.0
      %361 = vmatpush1.msra.mxu0 0.0
      %362 = vmatprep.subr.mxu0 0.0
      %363 = vmatpush1.msra.mxu0 0.0
      %364 = vmatprep.subr.mxu0 0.0
      %365 = vmatpush1.msra.mxu0 0.0
      %366 = vmatprep.subr.mxu0 0.0
      %367 = vmatpush1.msra.mxu0 0.0
      %368 = vmatprep.subr.mxu0 0.0
      %369 = vmatpush1.msra.mxu0 0.0
      %370 = vmatprep.subr.mxu0 0.0
      %371 = vmatpush1.msra.mxu0 0.0
      %372 = vmatprep.subr.mxu0 0.0
      %373 = vmatpush1.msra.mxu0 0.0
      %374 = vmatprep.subr.mxu0 0.0
      %375 = vmatpush1.msra.mxu0 0.0
      %376 = vmatprep.subr.mxu0 0.0
      %377 = vmatpush1.msra.mxu0 0.0
      %378 = vmatprep.subr.mxu0 0.0
      %379 = vmatpush1.msra.mxu0 0.0
      %380 = vmatprep.subr.mxu0 0.0
      %381 = vmatpush1.msra.mxu0 0.0
      %382 = vmatprep.subr.mxu0 0.0
      %383 = vmatpush1.msra.mxu0 0.0
      %384 = vmatprep.subr.mxu0 0.0
      %385 = vmatpush1.msra.mxu0 0.0
      %386 = vmatprep.subr.mxu0 0.0
      %387 = vmatpush1.msra.mxu0 0.0
      %388 = vmatprep.subr.mxu0 0.0
      %389 = vmatpush1.msra.mxu0 0.0
      %390 = vmatprep.subr.mxu0 0.0
      %391 = vmatpush1.msra.mxu0 0.0
      %392 = vmatprep.subr.mxu0 0.0
      %393 = vmatpush1.msra.mxu0 0.0
      %394 = vmatprep.subr.mxu0 0.0
      %395 = vmatpush1.msra.mxu0 0.0
      %396 = vmatprep.subr.mxu0 0.0
      %397 = vmatpush1.msra.mxu0 0.0
      %398 = vmatprep.subr.mxu0 0.0
      %399 = vmatpush1.msra.mxu0 0.0
      %400 = vmatprep.subr.mxu0 0.0
      %401 = vmatpush1.msra.mxu0 0.0
      %402 = vmatprep.subr.mxu0 0.0
      %403 = vmatpush1.msra.mxu0 0.0
      %404 = vmatprep.subr.mxu0 0.0
      %405 = vmatpush1.msra.mxu0 0.0
      %406 = vmatprep.subr.mxu0 0.0
      %407 = vmatpush1.msra.mxu0 0.0
      %408 = vmatprep.subr.mxu0 0.0
      %409 = vmatpush1.msra.mxu0 0.0
      %410 = vmatprep.subr.mxu0 0.0
      %411 = vmatpush1.msra.mxu0 0.0
      %412 = vmatprep.subr.mxu0 0.0
      %413 = vmatpush1.msra.mxu0 0.0
      %414 = vmatprep.subr.mxu0 0.0
      %415 = vmatpush1.msra.mxu0 0.0
      %416 = vmatprep.mubr.f32.mxu0 0.0
      %v417 = vand.u32 %v337, 4294901760
      %v418 = vsub.f32 %v337, %v417
      %v419 = vand.u32 %v418, 4294901760
      %v420 = vsub.f32 %v418, %v419
      %v421 = vand.u32 %v420, 4294901760
      %422 = vmatmul.mubr.f32.gmra.mrb[0].mxu0 %v421
      %v423 = vpop.f32.mrb[0].mxu0
      %v424 = vadd.f32 %v321, %v423
      %v425 = vpop.f32.mrb[0].mxu0
      %v426 = vadd.f32 %v321, %v425
      %427 = vmatprep.mubr.f32.mxu0 0.0
      %v428 = vand.u32 %v340, 4294901760
      %v429 = vsub.f32 %v340, %v428
      %v430 = vand.u32 %v429, 4294901760
      %v431 = vsub.f32 %v429, %v430
      %v432 = vand.u32 %v431, 4294901760
      %433 = vmatmul.mubr.f32.gmra.mrb[0].mxu0 %v432
      %v434 = vpop.f32.mrb[0].mxu0
      %v435 = vadd.f32 %v326, %v434
      %v436 = vpop.f32.mrb[0].mxu0
      %v437 = vadd.f32 %v326, %v436
      %438 = vmatprep.mubr.f32.mxu0 0.0
      %v439 = vand.u32 %v343, 4294901760
      %v440 = vsub.f32 %v343, %v439
      %v441 = vand.u32 %v440, 4294901760
      %v442 = vsub.f32 %v440, %v441
      %v443 = vand.u32 %v442, 4294901760
      %444 = vmatmul.mubr.f32.gmra.mrb[0].mxu0 %v443
      %v445 = vpop.f32.mrb[0].mxu0
      %v446 = vadd.f32 %v331, %v445
      %v447 = vpop.f32.mrb[0].mxu0
      %v448 = vadd.f32 %v331, %v447
      %449 = vdwg.mxu0
      %v450 = vand.u32 %v348, 4294901760
      %v451 = vsub.f32 %v348, %v450
      %v452 = vand.u32 %v451, 4294901760
      %v453 = vsub.f32 %v451, %v452
      %v454 = vand.u32 %v453, 4294901760
      %455 = vmatprep.subr.mxu0 %v454
      %v456 = vand.u32 %v346, 4294901760
      %v457 = vsub.f32 %v346, %v456
      %v458 = vand.u32 %v457, 4294901760
      %v459 = vsub.f32 %v457, %v458
      %v460 = vand.u32 %v459, 4294901760
      %461 = vmatpush1.msra.mxu0 %v460
      %462 = vmatprep.subr.mxu0 0.0
      %463 = vmatpush1.msra.mxu0 0.0
      %464 = vmatprep.subr.mxu0 0.0
      %465 = vmatpush1.msra.mxu0 0.0
      %466 = vmatprep.subr.mxu0 0.0
      %467 = vmatpush1.msra.mxu0 0.0
      %468 = vmatprep.subr.mxu0 0.0
      %469 = vmatpush1.msra.mxu0 0.0
      %470 = vmatprep.subr.mxu0 0.0
      %471 = vmatpush1.msra.mxu0 0.0
      %472 = vmatprep.subr.mxu0 0.0
      %473 = vmatpush1.msra.mxu0 0.0
      %474 = vmatprep.subr.mxu0 0.0
      %475 = vmatpush1.msra.mxu0 0.0
      %476 = vmatprep.subr.mxu0 0.0
      %477 = vmatpush1.msra.mxu0 0.0
      %478 = vmatprep.subr.mxu0 0.0
      %479 = vmatpush1.msra.mxu0 0.0
      %480 = vmatprep.subr.mxu0 0.0
      %481 = vmatpush1.msra.mxu0 0.0
      %482 = vmatprep.subr.mxu0 0.0
      %483 = vmatpush1.msra.mxu0 0.0
      %484 = vmatprep.subr.mxu0 0.0
      %485 = vmatpush1.msra.mxu0 0.0
      %486 = vmatprep.subr.mxu0 0.0
      %487 = vmatpush1.msra.mxu0 0.0
      %488 = vmatprep.subr.mxu0 0.0
      %489 = vmatpush1.msra.mxu0 0.0
      %490 = vmatprep.subr.mxu0 0.0
      %491 = vmatpush1.msra.mxu0 0.0
      %492 = vmatprep.subr.mxu0 0.0
      %493 = vmatpush1.msra.mxu0 0.0
      %494 = vmatprep.subr.mxu0 0.0
      %495 = vmatpush1.msra.mxu0 0.0
      %496 = vmatprep.subr.mxu0 0.0
      %497 = vmatpush1.msra.mxu0 0.0
      %498 = vmatprep.subr.mxu0 0.0
      %499 = vmatpush1.msra.mxu0 0.0
      %500 = vmatprep.subr.mxu0 0.0
      %501 = vmatpush1.msra.mxu0 0.0
      %502 = vmatprep.subr.mxu0 0.0
      %503 = vmatpush1.msra.mxu0 0.0
      %504 = vmatprep.subr.mxu0 0.0
      %505 = vmatpush1.msra.mxu0 0.0
      %506 = vmatprep.subr.mxu0 0.0
      %507 = vmatpush1.msra.mxu0 0.0
      %508 = vmatprep.subr.mxu0 0.0
      %509 = vmatpush1.msra.mxu0 0.0
      %510 = vmatprep.subr.mxu0 0.0
      %511 = vmatpush1.msra.mxu0 0.0
      %512 = vmatprep.subr.mxu0 0.0
      %513 = vmatpush1.msra.mxu0 0.0
      %514 = vmatprep.subr.mxu0 0.0
      %515 = vmatpush1.msra.mxu0 0.0
      %516 = vmatprep.subr.mxu0 0.0
      %517 = vmatpush1.msra.mxu0 0.0
      %518 = vmatprep.subr.mxu0 0.0
      %519 = vmatpush1.msra.mxu0 0.0
      %520 = vmatprep.subr.mxu0 0.0
      %521 = vmatpush1.msra.mxu0 0.0
      %522 = vmatprep.subr.mxu0 0.0
      %523 = vmatpush1.msra.mxu0 0.0
      %524 = vmatprep.mubr.f32.mxu0 0.0
      %v525 = vand.u32 %v337, 4294901760
      %526 = vmatmul.mubr.f32.gmra.mrb[0].mxu0 %v525
      %v527 = vpop.f32.mrb[0].mxu0
      %v528 = vadd.f32 %v424, %v527
      %v529 = vpop.f32.mrb[0].mxu0
      %v530 = vadd.f32 %v426, %v529
      %531 = vmatprep.mubr.f32.mxu0 0.0
      %v532 = vand.u32 %v340, 4294901760
      %533 = vmatmul.mubr.f32.gmra.mrb[0].mxu0 %v532
      %v534 = vpop.f32.mrb[0].mxu0
      %v535 = vadd.f32 %v435, %v534
      %v536 = vpop.f32.mrb[0].mxu0
      %v537 = vadd.f32 %v437, %v536
      %538 = vmatprep.mubr.f32.mxu0 0.0
      %v539 = vand.u32 %v343, 4294901760
      %540 = vmatmul.mubr.f32.gmra.mrb[0].mxu0 %v539
      %v541 = vpop.f32.mrb[0].mxu0
      %v542 = vadd.f32 %v446, %v541
      %v543 = vpop.f32.mrb[0].mxu0
      %v544 = vadd.f32 %v448, %v543
      %545 = vdwg.mxu0
      %v546 = vand.u32 %v348, 4294901760
      %v547 = vsub.f32 %v348, %v546
      %548 = vmatprep.subr.mxu0 %v547
      %v549 = vand.u32 %v346, 4294901760
      %v550 = vsub.f32 %v346, %v549
      %551 = vmatpush1.msra.mxu0 %v550
      %552 = vmatprep.subr.mxu0 0.0
      %553 = vmatpush1.msra.mxu0 0.0
      %554 = vmatprep.subr.mxu0 0.0
      %555 = vmatpush1.msra.mxu0 0.0
      %556 = vmatprep.subr.mxu0 0.0
      %557 = vmatpush1.msra.mxu0 0.0
      %558 = vmatprep.subr.mxu0 0.0
      %559 = vmatpush1.msra.mxu0 0.0
      %560 = vmatprep.subr.mxu0 0.0
      %561 = vmatpush1.msra.mxu0 0.0
      %562 = vmatprep.subr.mxu0 0.0
      %563 = vmatpush1.msra.mxu0 0.0
      %564 = vmatprep.subr.mxu0 0.0
      %565 = vmatpush1.msra.mxu0 0.0
      %566 = vmatprep.subr.mxu0 0.0
      %567 = vmatpush1.msra.mxu0 0.0
      %568 = vmatprep.subr.mxu0 0.0
      %569 = vmatpush1.msra.mxu0 0.0
      %570 = vmatprep.subr.mxu0 0.0
      %571 = vmatpush1.msra.mxu0 0.0
      %572 = vmatprep.subr.mxu0 0.0
      %573 = vmatpush1.msra.mxu0 0.0
      %574 = vmatprep.subr.mxu0 0.0
      %575 = vmatpush1.msra.mxu0 0.0
      %576 = vmatprep.subr.mxu0 0.0
      %577 = vmatpush1.msra.mxu0 0.0
      %578 = vmatprep.subr.mxu0 0.0
      %579 = vmatpush1.msra.mxu0 0.0
      %580 = vmatprep.subr.mxu0 0.0
      %581 = vmatpush1.msra.mxu0 0.0
      %582 = vmatprep.subr.mxu0 0.0
      %583 = vmatpush1.msra.mxu0 0.0
      %584 = vmatprep.subr.mxu0 0.0
      %585 = vmatpush1.msra.mxu0 0.0
      %586 = vmatprep.subr.mxu0 0.0
      %587 = vmatpush1.msra.mxu0 0.0
      %588 = vmatprep.subr.mxu0 0.0
      %589 = vmatpush1.msra.mxu0 0.0
      %590 = vmatprep.subr.mxu0 0.0
      %591 = vmatpush1.msra.mxu0 0.0
      %592 = vmatprep.subr.mxu0 0.0
      %593 = vmatpush1.msra.mxu0 0.0
      %594 = vmatprep.subr.mxu0 0.0
      %595 = vmatpush1.msra.mxu0 0.0
      %596 = vmatprep.subr.mxu0 0.0
      %597 = vmatpush1.msra.mxu0 0.0
      %598 = vmatprep.subr.mxu0 0.0
      %599 = vmatpush1.msra.mxu0 0.0
      %600 = vmatprep.subr.mxu0 0.0
      %601 = vmatpush1.msra.mxu0 0.0
      %602 = vmatprep.subr.mxu0 0.0
      %603 = vmatpush1.msra.mxu0 0.0
      %604 = vmatprep.subr.mxu0 0.0
      %605 = vmatpush1.msra.mxu0 0.0
      %606 = vmatprep.subr.mxu0 0.0
      %607 = vmatpush1.msra.mxu0 0.0
      %608 = vmatprep.subr.mxu0 0.0
      %609 = vmatpush1.msra.mxu0 0.0
      %610 = vmatprep.subr.mxu0 0.0
      %611 = vmatpush1.msra.mxu0 0.0
      %612 = vmatprep.subr.mxu0 0.0
      %613 = vmatpush1.msra.mxu0 0.0
      %614 = vmatprep.mubr.f32.mxu0 0.0
      %v615 = vand.u32 %v337, 4294901760
      %v616 = vsub.f32 %v337, %v615
      %617 = vmatmul.mubr.f32.gmra.mrb[0].mxu0 %v616
      %v618 = vpop.f32.mrb[0].mxu0
      %v619 = vadd.f32 %v528, %v618
      %v620 = vpop.f32.mrb[0].mxu0
      %v621 = vadd.f32 %v530, %v620
      %622 = vmatprep.mubr.f32.mxu0 0.0
      %v623 = vand.u32 %v340, 4294901760
      %v624 = vsub.f32 %v340, %v623
      %625 = vmatmul.mubr.f32.gmra.mrb[0].mxu0 %v624
      %v626 = vpop.f32.mrb[0].mxu0
      %v627 = vadd.f32 %v535, %v626
      %v628 = vpop.f32.mrb[0].mxu0
      %v629 = vadd.f32 %v537, %v628
      %630 = vmatprep.mubr.f32.mxu0 0.0
      %v631 = vand.u32 %v343, 4294901760
      %v632 = vsub.f32 %v343, %v631
      %633 = vmatmul.mubr.f32.gmra.mrb[0].mxu0 %v632
      %v634 = vpop.f32.mrb[0].mxu0
      %v635 = vadd.f32 %v542, %v634
      %v636 = vpop.f32.mrb[0].mxu0
      %v637 = vadd.f32 %v544, %v636
      %638 = vdwg.mxu0
      %v639 = vand.u32 %v348, 4294901760
      %640 = vmatprep.subr.mxu0 %v639
      %v641 = vand.u32 %v346, 4294901760
      %642 = vmatpush1.msra.mxu0 %v641
      %643 = vmatprep.subr.mxu0 0.0
      %644 = vmatpush1.msra.mxu0 0.0
      %645 = vmatprep.subr.mxu0 0.0
      %646 = vmatpush1.msra.mxu0 0.0
      %647 = vmatprep.subr.mxu0 0.0
      %648 = vmatpush1.msra.mxu0 0.0
      %649 = vmatprep.subr.mxu0 0.0
      %650 = vmatpush1.msra.mxu0 0.0
      %651 = vmatprep.subr.mxu0 0.0
      %652 = vmatpush1.msra.mxu0 0.0
      %653 = vmatprep.subr.mxu0 0.0
      %654 = vmatpush1.msra.mxu0 0.0
      %655 = vmatprep.subr.mxu0 0.0
      %656 = vmatpush1.msra.mxu0 0.0
      %657 = vmatprep.subr.mxu0 0.0
      %658 = vmatpush1.msra.mxu0 0.0
      %659 = vmatprep.subr.mxu0 0.0
      %660 = vmatpush1.msra.mxu0 0.0
      %661 = vmatprep.subr.mxu0 0.0
      %662 = vmatpush1.msra.mxu0 0.0
      %663 = vmatprep.subr.mxu0 0.0
      %664 = vmatpush1.msra.mxu0 0.0
      %665 = vmatprep.subr.mxu0 0.0
      %666 = vmatpush1.msra.mxu0 0.0
      %667 = vmatprep.subr.mxu0 0.0
      %668 = vmatpush1.msra.mxu0 0.0
      %669 = vmatprep.subr.mxu0 0.0
      %670 = vmatpush1.msra.mxu0 0.0
      %671 = vmatprep.subr.mxu0 0.0
      %672 = vmatpush1.msra.mxu0 0.0
      %673 = vmatprep.subr.mxu0 0.0
      %674 = vmatpush1.msra.mxu0 0.0
      %675 = vmatprep.subr.mxu0 0.0
      %676 = vmatpush1.msra.mxu0 0.0
      %677 = vmatprep.subr.mxu0 0.0
      %678 = vmatpush1.msra.mxu0 0.0
      %679 = vmatprep.subr.mxu0 0.0
      %680 = vmatpush1.msra.mxu0 0.0
      %681 = vmatprep.subr.mxu0 0.0
      %682 = vmatpush1.msra.mxu0 0.0
      %683 = vmatprep.subr.mxu0 0.0
      %684 = vmatpush1.msra.mxu0 0.0
      %685 = vmatprep.subr.mxu0 0.0
      %686 = vmatpush1.msra.mxu0 0.0
      %687 = vmatprep.subr.mxu0 0.0
      %688 = vmatpush1.msra.mxu0 0.0
      %689 = vmatprep.subr.mxu0 0.0
      %690 = vmatpush1.msra.mxu0 0.0
      %691 = vmatprep.subr.mxu0 0.0
      %692 = vmatpush1.msra.mxu0 0.0
      %693 = vmatprep.subr.mxu0 0.0
      %694 = vmatpush1.msra.mxu0 0.0
      %695 = vmatprep.subr.mxu0 0.0
      %696 = vmatpush1.msra.mxu0 0.0
      %697 = vmatprep.subr.mxu0 0.0
      %698 = vmatpush1.msra.mxu0 0.0
      %699 = vmatprep.subr.mxu0 0.0
      %700 = vmatpush1.msra.mxu0 0.0
      %701 = vmatprep.subr.mxu0 0.0
      %702 = vmatpush1.msra.mxu0 0.0
      %703 = vmatprep.subr.mxu0 0.0
      %704 = vmatpush1.msra.mxu0 0.0
      %705 = vmatprep.mubr.f32.mxu0 0.0
      %v706 = vand.u32 %v337, 4294901760
      %v707 = vsub.f32 %v337, %v706
      %v708 = vand.u32 %v707, 4294901760
      %709 = vmatmul.mubr.f32.gmra.mrb[0].mxu0 %v708
      %v710 = vpop.f32.mrb[0].mxu0
      %v711 = vadd.f32 %v619, %v710
      %v712 = vpop.f32.mrb[0].mxu0
      %v713 = vadd.f32 %v621, %v712
      %714 = vmatprep.mubr.f32.mxu0 0.0
      %v715 = vand.u32 %v340, 4294901760
      %v716 = vsub.f32 %v340, %v715
      %v717 = vand.u32 %v716, 4294901760
      %718 = vmatmul.mubr.f32.gmra.mrb[0].mxu0 %v717
      %v719 = vpop.f32.mrb[0].mxu0
      %v720 = vadd.f32 %v627, %v719
      %v721 = vpop.f32.mrb[0].mxu0
      %v722 = vadd.f32 %v629, %v721
      %723 = vmatprep.mubr.f32.mxu0 0.0
      %v724 = vand.u32 %v343, 4294901760
      %v725 = vsub.f32 %v343, %v724
      %v726 = vand.u32 %v725, 4294901760
      %727 = vmatmul.mubr.f32.gmra.mrb[0].mxu0 %v726
      %v728 = vpop.f32.mrb[0].mxu0
      %v729 = vadd.f32 %v635, %v728
      %v730 = vpop.f32.mrb[0].mxu0
      %v731 = vadd.f32 %v637, %v730
      %732 = vdwg.mxu0
      %v733 = vand.u32 %v348, 4294901760
      %v734 = vsub.f32 %v348, %v733
      %v735 = vand.u32 %v734, 4294901760
      %736 = vmatprep.subr.mxu0 %v735
      %v737 = vand.u32 %v346, 4294901760
      %v738 = vsub.f32 %v346, %v737
      %v739 = vand.u32 %v738, 4294901760
      %740 = vmatpush1.msra.mxu0 %v739
      %741 = vmatprep.subr.mxu0 0.0
      %742 = vmatpush1.msra.mxu0 0.0
      %743 = vmatprep.subr.mxu0 0.0
      %744 = vmatpush1.msra.mxu0 0.0
      %745 = vmatprep.subr.mxu0 0.0
      %746 = vmatpush1.msra.mxu0 0.0
      %747 = vmatprep.subr.mxu0 0.0
      %748 = vmatpush1.msra.mxu0 0.0
      %749 = vmatprep.subr.mxu0 0.0
      %750 = vmatpush1.msra.mxu0 0.0
      %751 = vmatprep.subr.mxu0 0.0
      %752 = vmatpush1.msra.mxu0 0.0
      %753 = vmatprep.subr.mxu0 0.0
      %754 = vmatpush1.msra.mxu0 0.0
      %755 = vmatprep.subr.mxu0 0.0
      %756 = vmatpush1.msra.mxu0 0.0
      %757 = vmatprep.subr.mxu0 0.0
      %758 = vmatpush1.msra.mxu0 0.0
      %759 = vmatprep.subr.mxu0 0.0
      %760 = vmatpush1.msra.mxu0 0.0
      %761 = vmatprep.subr.mxu0 0.0
      %762 = vmatpush1.msra.mxu0 0.0
      %763 = vmatprep.subr.mxu0 0.0
      %764 = vmatpush1.msra.mxu0 0.0
      %765 = vmatprep.subr.mxu0 0.0
      %766 = vmatpush1.msra.mxu0 0.0
      %767 = vmatprep.subr.mxu0 0.0
      %768 = vmatpush1.msra.mxu0 0.0
      %769 = vmatprep.subr.mxu0 0.0
      %770 = vmatpush1.msra.mxu0 0.0
      %771 = vmatprep.subr.mxu0 0.0
      %772 = vmatpush1.msra.mxu0 0.0
      %773 = vmatprep.subr.mxu0 0.0
      %774 = vmatpush1.msra.mxu0 0.0
      %775 = vmatprep.subr.mxu0 0.0
      %776 = vmatpush1.msra.mxu0 0.0
      %777 = vmatprep.subr.mxu0 0.0
      %778 = vmatpush1.msra.mxu0 0.0
      %779 = vmatprep.subr.mxu0 0.0
      %780 = vmatpush1.msra.mxu0 0.0
      %781 = vmatprep.subr.mxu0 0.0
      %782 = vmatpush1.msra.mxu0 0.0
      %783 = vmatprep.subr.mxu0 0.0
      %784 = vmatpush1.msra.mxu0 0.0
      %785 = vmatprep.subr.mxu0 0.0
      %786 = vmatpush1.msra.mxu0 0.0
      %787 = vmatprep.subr.mxu0 0.0
      %788 = vmatpush1.msra.mxu0 0.0
      %789 = vmatprep.subr.mxu0 0.0
      %790 = vmatpush1.msra.mxu0 0.0
      %791 = vmatprep.subr.mxu0 0.0
      %792 = vmatpush1.msra.mxu0 0.0
      %793 = vmatprep.subr.mxu0 0.0
      %794 = vmatpush1.msra.mxu0 0.0
      %795 = vmatprep.subr.mxu0 0.0
      %796 = vmatpush1.msra.mxu0 0.0
      %797 = vmatprep.subr.mxu0 0.0
      %798 = vmatpush1.msra.mxu0 0.0
      %799 = vmatprep.subr.mxu0 0.0
      %800 = vmatpush1.msra.mxu0 0.0
      %801 = vmatprep.subr.mxu0 0.0
      %802 = vmatpush1.msra.mxu0 0.0
      %803 = vmatprep.mubr.f32.mxu0 0.0
      %v804 = vand.u32 %v337, 4294901760
      %805 = vmatmul.mubr.f32.gmra.mrb[0].mxu0 %v804
      %v806 = vpop.f32.mrb[0].mxu0
      %v807 = vadd.f32 %v711, %v806
      %v808 = vpop.f32.mrb[0].mxu0
      %v809 = vadd.f32 %v713, %v808
      %810 = vmatprep.mubr.f32.mxu0 0.0
      %v811 = vand.u32 %v340, 4294901760
      %812 = vmatmul.mubr.f32.gmra.mrb[0].mxu0 %v811
      %v813 = vpop.f32.mrb[0].mxu0
      %v814 = vadd.f32 %v720, %v813
      %v815 = vpop.f32.mrb[0].mxu0
      %v816 = vadd.f32 %v722, %v815
      %817 = vmatprep.mubr.f32.mxu0 0.0
      %v818 = vand.u32 %v343, 4294901760
      %819 = vmatmul.mubr.f32.gmra.mrb[0].mxu0 %v818
      %v820 = vpop.f32.mrb[0].mxu0
      %v821 = vadd.f32 %v729, %v820
      %v822 = vpop.f32.mrb[0].mxu0
      %v823 = vadd.f32 %v731, %v822
      %824 = vdwg.mxu0
      %v825 = vand.u32 %v348, 4294901760
      %826 = vmatprep.subr.mxu0 %v825
      %v827 = vand.u32 %v346, 4294901760
      %828 = vmatpush1.msra.mxu0 %v827
      %829 = vmatprep.subr.mxu0 0.0
      %830 = vmatpush1.msra.mxu0 0.0
      %831 = vmatprep.subr.mxu0 0.0
      %832 = vmatpush1.msra.mxu0 0.0
      %833 = vmatprep.subr.mxu0 0.0
      %834 = vmatpush1.msra.mxu0 0.0
      %835 = vmatprep.subr.mxu0 0.0
      %836 = vmatpush1.msra.mxu0 0.0
      %837 = vmatprep.subr.mxu0 0.0
      %838 = vmatpush1.msra.mxu0 0.0
      %839 = vmatprep.subr.mxu0 0.0
      %840 = vmatpush1.msra.mxu0 0.0
      %841 = vmatprep.subr.mxu0 0.0
      %842 = vmatpush1.msra.mxu0 0.0
      %843 = vmatprep.subr.mxu0 0.0
      %844 = vmatpush1.msra.mxu0 0.0
      %845 = vmatprep.subr.mxu0 0.0
      %846 = vmatpush1.msra.mxu0 0.0
      %847 = vmatprep.subr.mxu0 0.0
      %848 = vmatpush1.msra.mxu0 0.0
      %849 = vmatprep.subr.mxu0 0.0
      %850 = vmatpush1.msra.mxu0 0.0
      %851 = vmatprep.subr.mxu0 0.0
      %852 = vmatpush1.msra.mxu0 0.0
      %853 = vmatprep.subr.mxu0 0.0
      %854 = vmatpush1.msra.mxu0 0.0
      %855 = vmatprep.subr.mxu0 0.0
      %856 = vmatpush1.msra.mxu0 0.0
      %857 = vmatprep.subr.mxu0 0.0
      %858 = vmatpush1.msra.mxu0 0.0
      %859 = vmatprep.subr.mxu0 0.0
      %860 = vmatpush1.msra.mxu0 0.0
      %861 = vmatprep.subr.mxu0 0.0
      %862 = vmatpush1.msra.mxu0 0.0
      %863 = vmatprep.subr.mxu0 0.0
      %864 = vmatpush1.msra.mxu0 0.0
      %865 = vmatprep.subr.mxu0 0.0
      %866 = vmatpush1.msra.mxu0 0.0
      %867 = vmatprep.subr.mxu0 0.0
      %868 = vmatpush1.msra.mxu0 0.0
      %869 = vmatprep.subr.mxu0 0.0
      %870 = vmatpush1.msra.mxu0 0.0
      %871 = vmatprep.subr.mxu0 0.0
      %872 = vmatpush1.msra.mxu0 0.0
      %873 = vmatprep.subr.mxu0 0.0
      %874 = vmatpush1.msra.mxu0 0.0
      %875 = vmatprep.subr.mxu0 0.0
      %876 = vmatpush1.msra.mxu0 0.0
      %877 = vmatprep.subr.mxu0 0.0
      %878 = vmatpush1.msra.mxu0 0.0
      %879 = vmatprep.subr.mxu0 0.0
      %880 = vmatpush1.msra.mxu0 0.0
      %881 = vmatprep.subr.mxu0 0.0
      %882 = vmatpush1.msra.mxu0 0.0
      %883 = vmatprep.subr.mxu0 0.0
      %884 = vmatpush1.msra.mxu0 0.0
      %885 = vmatprep.subr.mxu0 0.0
      %886 = vmatpush1.msra.mxu0 0.0
      %887 = vmatprep.subr.mxu0 0.0
      %888 = vmatpush1.msra.mxu0 0.0
      %889 = vmatprep.subr.mxu0 0.0
      %890 = vmatpush1.msra.mxu0 0.0
      %891 = vmatprep.mubr.f32.mxu0 0.0
      %v892 = vand.u32 %v337, 4294901760
      %893 = vmatmul.mubr.f32.gmra.mrb[0].mxu0 %v892
      %v894 = vpop.f32.mrb[0].mxu0
      %v895 = vadd.f32 %v807, %v894
      %v896 = vpop.f32.mrb[0].mxu0
      %v897 = vadd.f32 %v809, %v896
      %898 = vmatprep.mubr.f32.mxu0 0.0
      %v899 = vand.u32 %v340, 4294901760
      %900 = vmatmul.mubr.f32.gmra.mrb[0].mxu0 %v899
      %v901 = vpop.f32.mrb[0].mxu0
      %v902 = vadd.f32 %v814, %v901
      %v903 = vpop.f32.mrb[0].mxu0
      %v904 = vadd.f32 %v816, %v903
      %905 = vmatprep.mubr.f32.mxu0 0.0
      %v906 = vand.u32 %v343, 4294901760
      %907 = vmatmul.mubr.f32.gmra.mrb[0].mxu0 %v906
      %v908 = vpop.f32.mrb[0].mxu0
      %v909 = vadd.f32 %v821, %v908
      %v910 = vpop.f32.mrb[0].mxu0
      %v911 = vadd.f32 %v823, %v910
      %912 = vdwg.mxu0
      %913 = vst [vmem:[%s289] sm:$0xff] %v895
      %914 = vst [vmem:[%s289 + $0x8] sm:$0xff] %v897
      %915 = vst [vmem:[%s289 + $0x10] sm:$0x3f] %v902
      %916 = vst [vmem:[%s289 + $0x18] sm:$0x3f] %v904
      %v919 = vcombine.high %v902, %v904
      %v921 = vunpack.c.l.s4 1983009808
      %v922 = vunpack.c.0.s8 %v921
      %v923 = vlaneseq
      %v924 = vshrl.u32 %v923, 7
      %v925 = vsub.s32 %v922, %v924
      %v926 = vrot.slane %v919, %v925
      %v927 = vcombine.high %v926, %v926
      %929 = vst [vmem:[%s299] sm:$0xf] %v927
      %v932 = vcombine.low %v909, %v911
      %v934 = vunpack.c.l.s4 1983009808
      %v935 = vunpack.c.0.s8 %v934
      %v936 = vlaneseq
      %v937 = vshrl.u32 %v936, 7
      %v938 = vsub.s32 %v935, %v937
      %v939 = vrot.slane %v932, %v938
      %941 = vst [vmem:[%s309] sm:$0xf] %v939
      %s942 = smul.u32 2, %s22
      %p943 = scmp.lt.s32.totalorder %s21, 1
      %s944 = scalar_select %p943, %s21, 1
      %p945 = scmp.lt.s32.totalorder %s942, 1
      %s946 = scalar_select %p945, %s942, 1
      %s947 = smul.addr %s944, 4
      %s948 = sadd.s32 %s946, %s947
      %s949 = smul.addr %s948, 8
      %s950 = scalar_lea.vmem %s3, %s949
      %s951 = smul.u32 2, %s22
      %p952 = scmp.lt.s32.totalorder %s21, 1
      %s953 = scalar_select %p952, %s21, 1
      %p954 = scmp.lt.s32.totalorder %s951, 1
      %s955 = scalar_select %p954, %s951, 1
      %s956 = smul.addr %s953, 2
      %s957 = sadd.s32 %s955, %s956
      %s958 = smul.addr %s957, 2
      %s959 = scalar_lea.vmem %s4, %s958
      %s960 = smul.u32 2, %s22
      %p961 = scmp.lt.s32.totalorder %s21, 1
      %s962 = scalar_select %p961, %s21, 1
      %p963 = scmp.lt.s32.totalorder %s960, 1
      %s964 = scalar_select %p963, %s960, 1
      %s965 = smul.addr %s962, 2
      %s966 = sadd.s32 %s964, %s965
      %s967 = smul.addr %s966, 2
      %s968 = scalar_lea.vmem %s5, %s967
      // Predicated region
      $region33: #{head_forward.1} parent=31 // pred_check
        %p969 = pneg %p119
      $region34: #{head_forward.1} parent=31 // pred_check_branch
        %971 = sbr.rel (%p969) target = $region36
      $region35: #{head_forward.1} parent=31 // pred_region
        %s972 = smul.u32 2, %s22
      $region36: #{head_forward.1} parent=31 // pred_fallthru
        _
      // Predicated region
      $region37: #{head_forward.1} parent=31 // pred_check
        %p973 = pneg %p147
      $region38: #{head_forward.1} parent=31 // pred_check_branch
        %975 = sbr.rel (%p973) target = $region40
      $region39: #{head_forward.1} parent=31 // pred_region
        %s976 = smul.u32 2, %s22
      $region40: #{head_forward.1} parent=31 // pred_fallthru
        _
      // Predicated region
      $region41: #{head_forward.1} parent=31 // pred_check
        %p977 = pneg %p175
      $region42: #{head_forward.1} parent=31 // pred_check_branch
        %979 = sbr.rel (%p977) target = $region44
      $region43: #{head_forward.1} parent=31 // pred_region
        %s980 = smul.u32 2, %s22
      $region44: #{head_forward.1} parent=31 // pred_fallthru
        _
    $region32: #{head_forward.1} parent=5 // pred_fallthru
      _
    %p981 = scmp.le.s32.totalorder 2, %s12
    // Predicated region
    $region45: #{head_forward.1} parent=5 // pred_check
      %p982 = pneg %p981
    $region46: #{head_forward.1} parent=5 // pred_check_branch
      %984 = sbr.rel (%p982) target = $region48
    $region47: #{head_forward.1} parent=5 // pred_region
      %s985 = ssub.s32 %s12, 2
      // Predicated region
      $region49: #{head_forward.1} parent=47 // pred_check
        %p986 = pneg %p125
      $region50: #{head_forward.1} parent=47 // pred_check_branch
        %988 = sbr.rel (%p986) target = $region52
      $region51: #{head_forward.1} parent=47 // pred_region
        %s989 = smul.u32 2, %s24
        %p990 = scmp.lt.s32.totalorder %s23, 1
        %s991 = scalar_select %p990, %s23, 1
        %p992 = scmp.lt.s32.totalorder %s989, 1
        %s993 = scalar_select %p992, %s989, 1
        %s994 = smul.addr %s991, 4
        %s995 = sadd.s32 %s993, %s994
        %s996 = smul.addr %s995, 8
        %s997 = scalar_lea.vmem %s3, %s996
      $region52: #{head_forward.1} parent=47 // pred_fallthru
        _
      // Predicated region
      $region53: #{head_forward.1} parent=47 // pred_check
        %p998 = pneg %p153
      $region54: #{head_forward.1} parent=47 // pred_check_branch
        %1000 = sbr.rel (%p998) target = $region56
      $region55: #{head_forward.1} parent=47 // pred_region
        %s1001 = smul.u32 2, %s24
        %p1002 = scmp.lt.s32.totalorder %s23, 1
        %s1003 = scalar_select %p1002, %s23, 1
        %p1004 = scmp.lt.s32.totalorder %s1001, 1
        %s1005 = scalar_select %p1004, %s1001, 1
        %s1006 = smul.addr %s1003, 2
        %s1007 = sadd.s32 %s1005, %s1006
        %s1008 = smul.addr %s1007, 2
        %s1009 = scalar_lea.vmem %s4, %s1008
      $region56: #{head_forward.1} parent=47 // pred_fallthru
        _
      // Predicated region
      $region57: #{head_forward.1} parent=47 // pred_check
        %p1010 = pneg %p181
      $region58: #{head_forward.1} parent=47 // pred_check_branch
        %1012 = sbr.rel (%p1010) target = $region60
      $region59: #{head_forward.1} parent=47 // pred_region
        %s1013 = smul.u32 2, %s24
        %p1014 = scmp.lt.s32.totalorder %s23, 1
        %s1015 = scalar_select %p1014, %s23, 1
        %p1016 = scmp.lt.s32.totalorder %s1013, 1
        %s1017 = scalar_select %p1016, %s1013, 1
        %s1018 = smul.addr %s1015, 2
        %s1019 = sadd.s32 %s1017, %s1018
        %s1020 = smul.addr %s1019, 2
        %s1021 = scalar_lea.vmem %s5, %s1020
      $region60: #{head_forward.1} parent=47 // pred_fallthru
        _
    $region48: #{head_forward.1} parent=5 // pred_fallthru
      _
  $region6: #{head_forward.1} parent=0 // loop_footer
    %s16 = sadd.s32 1, %s12
  $region7: #{head_forward.1} parent=0 // loop_footer_branch
    %11 = sbr.rel target = $region3
  $region8: #{head_forward.1} parent=0 // loop_exit
    _

</llo_original>
